<compile_context>
chip_gen: v7x
topology: tpu7x:2x2x1
jax: 0.10.0
libtpu: 0.0.40
codegen_flags: <defaults>
</compile_context>

<pallas_src>
import jax
import jax.numpy as jnp
from jax.experimental import pallas as pl
from jax.experimental.pallas import tpu as pltpu

KH = KW = 5
CIN = 1
COUT = 10
H = W = 10                  # Linear(90, 2) forces a 10x10 input image
HW = H * W                  # 100
OH = OW = H - KH + 1        # 6  (valid conv)
PH = PW = OH // 2           # 3  (maxpool k=2)
FC_IN = COUT * PH * PW      # 90
FC_OUT = 2
POOL_GROUP = 128            # 90 pooled features padded to a full lane group
N_POOL = 4                  # 2x2 pooling window positions
CONV_COLS = N_POOL * POOL_GROUP   # 512
TB_MAX = 2048               # batch tile (slim intermediates -> ~3-4 MiB/tile)


def _round_up(n, m):
    return ((n + m - 1) // m) * m


def mymodel_kernel(x_ref, wconv_ref, bconv_ref, wfc_ref, bfc_ref, o_ref):
    # x_ref:     (TB, 100)       f32   batch x flattened 10x10 image
    # wconv_ref: (100, 512)      f32   unrolled conv matrix (4 pool-pos groups of 128)
    # bconv_ref: (1, 128)        f32   conv bias in pooled (ph,pw,c) order, padded
    # wfc_ref:   (128, 2)        f32   fc weight, (ph,pw,c)-ordered rows, zero-padded
    # bfc_ref:   (1, 2)          f32
    # o_ref:     (TB, 2)         f32
    x = x_ref[...]                                                    # (TB,100)
    g = POOL_GROUP

    # Conv2d(1,10,5) folded into 4 lane-aligned (TB,100)x(100,128) matmuls,
    # with MaxPool2d(2) realized as a running elementwise max over the 4
    # pooling-window positions.  No (TB,512) intermediate is ever live.
    m = jnp.dot(x, wconv_ref[:, 0:g], preferred_element_type=jnp.float32)
    for s in range(1, N_POOL):                                        # unrolled
        part = jnp.dot(x, wconv_ref[:, s * g:(s + 1) * g],
                       preferred_element_type=jnp.float32)
        m = jnp.maximum(m, part)                                      # (TB,128)

    # Bias + ReLU after the pool (exact: identical bias per group, ReLU
    # commutes with max) -- one add and one max on a single (TB,128) tensor.
    pooled = jnp.maximum(m + bconv_ref[...], 0.0)                     # (TB,128)

    # Linear(90, 2) as one matmul (padded rows of wfc are zero).
    o_ref[...] = (jnp.dot(pooled, wfc_ref[...],
                          preferred_element_type=jnp.float32)
                  + bfc_ref[...])                                     # (TB,2)


def _build_conv_matrix(wconv):
    """Unrolled conv matrix (100, 512) whose columns are ordered
    s*128 + (ph*PW + pw)*COUT + c, with s indexing the 2x2 pooling offsets."""
    w = jnp.transpose(wconv[:, 0], (1, 2, 0)).astype(jnp.float32)     # (5,5,10) [kh,kw,c]
    r = jnp.arange(H).reshape(H, 1, 1, 1, 1)
    col = jnp.arange(W).reshape(1, W, 1, 1, 1)
    di = jnp.array([0, 0, 1, 1]).reshape(1, 1, N_POOL, 1, 1)
    dj = jnp.array([0, 1, 0, 1]).reshape(1, 1, N_POOL, 1, 1)
    pi = jnp.arange(PH).reshape(1, 1, 1, PH, 1)
    pj = jnp.arange(PW).reshape(1, 1, 1, 1, PW)
    oi = 2 * pi + di                                                  # conv output row
    oj = 2 * pj + dj                                                  # conv output col
    ki = r - oi                                                       # (H,1,4,PH,1)
    kj = col - oj                                                     # (1,W,4,1,PW)
    valid = (ki >= 0) & (ki < KH) & (kj >= 0) & (kj < KW)             # (H,W,4,PH,PW)
    wg = w[jnp.clip(ki, 0, KH - 1), jnp.clip(kj, 0, KW - 1)]          # (H,W,4,PH,PW,10)
    wm = jnp.where(valid[..., None], wg, 0.0)
    wm = wm.reshape(HW, N_POOL, PH * PW * COUT)                       # (100,4,90)
    wm = jnp.pad(wm, ((0, 0), (0, 0), (0, POOL_GROUP - FC_IN)))       # (100,4,128)
    return wm.reshape(HW, CONV_COLS)                                  # (100,512)


@jax.jit
def mymodel_forward(x, wconv, bconv, wfc, bfc):
    """x: (B,10,10) f32 ; wconv: (10,1,5,5) OIHW ; bconv: (10,) ; wfc: (2,90) ; bfc: (2,)."""
    B = x.shape[0]
    x_flat = x.reshape(B, HW).astype(jnp.float32)                     # (B,100) lane-dense

    wconv_mat = _build_conv_matrix(wconv)                             # (100,512)
    b90 = jnp.tile(bconv.astype(jnp.float32), PH * PW)                # (90,) bias per (ph,pw,c)
    bconv_row = jnp.pad(b90, (0, POOL_GROUP - FC_IN)
                        ).reshape(1, POOL_GROUP)                      # (1,128)
    # fc weight permuted so pooled (ph,pw,c) order reproduces PyTorch NCHW flatten.
    wfc_r = jnp.transpose(wfc.reshape(FC_OUT, COUT, PH, PW),
                          (2, 3, 1, 0)).reshape(FC_IN, FC_OUT)        # (90,2)
    wfc_mat = jnp.pad(wfc_r, ((0, POOL_GROUP - FC_IN), (0, 0))
                      ).astype(jnp.float32)                           # (128,2)
    bfc_row = bfc.reshape(1, FC_OUT).astype(jnp.float32)              # (1,2)

    # Batch tiling: aim for >= 2 grid steps (so v7x's two TensorCores both get
    # work via dimension_semantics=("parallel",)), capped at TB_MAX.
    b8 = _round_up(B, 8)
    if b8 > 8:
        tb = min(TB_MAX, _round_up((b8 + 1) // 2, 8))
    else:
        tb = b8
    b_pad = _round_up(B, tb)
    if b_pad != B:
        x_flat = jnp.pad(x_flat, ((0, b_pad - B), (0, 0)))
    grid = (b_pad // tb,)

    flops = 2 * b_pad * (HW * CONV_COLS + POOL_GROUP * FC_OUT)
    bytes_accessed = 4 * (b_pad * (HW + FC_OUT) + HW * CONV_COLS
                          + POOL_GROUP + POOL_GROUP * FC_OUT + FC_OUT)

    out = pl.pallas_call(
        mymodel_kernel,
        out_shape=jax.ShapeDtypeStruct((b_pad, FC_OUT), jnp.float32),
        grid=grid,
        in_specs=[
            pl.BlockSpec((tb, HW), lambda i: (i, 0)),                 # x: batch-blocked
            pl.BlockSpec((HW, CONV_COLS), lambda i: (0, 0)),          # conv matrix: resident
            pl.BlockSpec((1, POOL_GROUP), lambda i: (0, 0)),          # conv bias: resident
            pl.BlockSpec((POOL_GROUP, FC_OUT), lambda i: (0, 0)),     # fc weight: resident
            pl.BlockSpec((1, FC_OUT), lambda i: (0, 0)),              # fc bias: resident
        ],
        out_specs=pl.BlockSpec((tb, FC_OUT), lambda i: (i, 0)),
        compiler_params=pltpu.CompilerParams(
            dimension_semantics=("parallel",)),
        cost_estimate=pl.CostEstimate(flops=flops, transcendentals=0,
                                      bytes_accessed=bytes_accessed),
    )(x_flat, wconv_mat, bconv_row, wfc_mat, bfc_row)
    return out[:B]


def reference_forward(x, wconv, bconv, wfc, bfc):
    """Pure-JAX reference matching the PyTorch forward (NCHW)."""
    xn = x[:, None, :, :]
    conv = jax.lax.conv_general_dilated(
        xn, wconv, window_strides=(1, 1), padding="VALID",
        dimension_numbers=("NCHW", "OIHW", "NCHW"),
        precision=jax.lax.Precision.HIGHEST)
    conv = jnp.maximum(conv + bconv[None, :, None, None], 0.0)
    pooled = jax.lax.reduce_window(conv, -jnp.inf, jax.lax.max,
                                   (1, 1, 2, 2), (1, 1, 2, 2), "VALID")
    flat = pooled.reshape(pooled.shape[0], -1)
    return jnp.dot(flat, wfc.T, precision=jax.lax.Precision.HIGHEST) + bfc


if __name__ == "__main__":
    key = jax.random.PRNGKey(0)
    kx, kw1, kb1, kw2, kb2 = jax.random.split(key, 5)
    B = 2

    x = jax.random.normal(kx, (B, H, W), jnp.float32)
    cbound = 1.0 / (CIN * KH * KW) ** 0.5
    wconv = jax.random.uniform(kw1, (COUT, CIN, KH, KW), jnp.float32, -cbound, cbound)
    bconv = jax.random.uniform(kb1, (COUT,), jnp.float32, -cbound, cbound)
    fbound = 1.0 / FC_IN ** 0.5
    wfc = jax.random.uniform(kw2, (FC_OUT, FC_IN), jnp.float32, -fbound, fbound)
    bfc = jax.random.uniform(kb2, (FC_OUT,), jnp.float32, -fbound, fbound)

    out = mymodel_forward(x, wconv, bconv, wfc, bfc)
    jax.block_until_ready(out)

    ref = reference_forward(x, wconv, bconv, wfc, bfc)
    assert out.shape == (B, FC_OUT), out.shape
    if not jnp.allclose(out, ref, atol=1e-4, rtol=1e-4):
        raise AssertionError(f"kernel/reference mismatch:\n{out}\nvs\n{ref}")

    print("KERNEL_OK")
</pallas_src>

<mosaic_0001>
module attributes {stable_mosaic.version = 11 : i64} {
  func.func @mymodel_kernel(%arg0: i32, %arg1: memref<8x100xf32, #tpu.memory_space<vmem>>, %arg2: memref<100x512xf32, #tpu.memory_space<vmem>>, %arg3: memref<1x128xf32, #tpu.memory_space<vmem>>, %arg4: memref<128x2xf32, #tpu.memory_space<vmem>>, %arg5: memref<1x2xf32, #tpu.memory_space<vmem>>, %arg6: memref<8x2xf32, #tpu.memory_space<vmem>>) attributes {dimension_semantics = [#tpu.dimension_semantics<parallel>], iteration_bounds = array<i64: 1>, scalar_prefetch = 0 : i64, scratch_operands = 0 : i64, tpu.core_type = #tpu.core_type<tc>, window_params = [{transform_indices = @transform_0, window_bounds = array<i64: 8, 100>}, {pipeline_mode = #tpu.pipeline_mode<synchronous>, transform_indices = @transform_1, window_bounds = array<i64: 100, 512>}, {pipeline_mode = #tpu.pipeline_mode<synchronous>, transform_indices = @transform_2, window_bounds = array<i64: 1, 128>}, {pipeline_mode = #tpu.pipeline_mode<synchronous>, transform_indices = @transform_3, window_bounds = array<i64: 128, 2>}, {pipeline_mode = #tpu.pipeline_mode<synchronous>, transform_indices = @transform_4, window_bounds = array<i64: 1, 2>}, {transform_indices = @transform_5, window_bounds = array<i64: 8, 2>}]} {
    %c0 = arith.constant 0 : index
    %c0_0 = arith.constant 0 : index
    %0 = vector.load %arg1[%c0, %c0_0] : memref<8x100xf32, #tpu.memory_space<vmem>>, vector<8x100xf32>
    %c0_1 = arith.constant 0 : index
    %c0_2 = arith.constant 0 : index
    %1 = vector.load %arg2[%c0_1, %c0_2] : memref<100x512xf32, #tpu.memory_space<vmem>>, vector<100x128xf32>
    %cst = arith.constant dense<0.000000e+00> : vector<8x128xf32>
    %2 = tpu.matmul %0, %1, %cst {dimension_numbers = #tpu.dot_dimension_numbers<[1], [0], [0], [1], [0, 0, 1, 1], [], []>} : vector<8x100xf32>, vector<100x128xf32>, vector<8x128xf32> -> vector<8x128xf32>
    %c0_3 = arith.constant 0 : index
    %c128 = arith.constant 128 : index
    %3 = vector.load %arg2[%c0_3, %c128] : memref<100x512xf32, #tpu.memory_space<vmem>>, vector<100x128xf32>
    %cst_4 = arith.constant dense<0.000000e+00> : vector<8x128xf32>
    %4 = tpu.matmul %0, %3, %cst_4 {dimension_numbers = #tpu.dot_dimension_numbers<[1], [0], [0], [1], [0, 0, 1, 1], [], []>} : vector<8x100xf32>, vector<100x128xf32>, vector<8x128xf32> -> vector<8x128xf32>
    %5 = arith.maximumf %2, %4 : vector<8x128xf32>
    %c0_5 = arith.constant 0 : index
    %c256 = arith.constant 256 : index
    %6 = vector.load %arg2[%c0_5, %c256] : memref<100x512xf32, #tpu.memory_space<vmem>>, vector<100x128xf32>
    %cst_6 = arith.constant dense<0.000000e+00> : vector<8x128xf32>
    %7 = tpu.matmul %0, %6, %cst_6 {dimension_numbers = #tpu.dot_dimension_numbers<[1], [0], [0], [1], [0, 0, 1, 1], [], []>} : vector<8x100xf32>, vector<100x128xf32>, vector<8x128xf32> -> vector<8x128xf32>
    %8 = arith.maximumf %5, %7 : vector<8x128xf32>
    %c0_7 = arith.constant 0 : index
    %c384 = arith.constant 384 : index
    %9 = vector.load %arg2[%c0_7, %c384] : memref<100x512xf32, #tpu.memory_space<vmem>>, vector<100x128xf32>
    %cst_8 = arith.constant dense<0.000000e+00> : vector<8x128xf32>
    %10 = tpu.matmul %0, %9, %cst_8 {dimension_numbers = #tpu.dot_dimension_numbers<[1], [0], [0], [1], [0, 0, 1, 1], [], []>} : vector<8x100xf32>, vector<100x128xf32>, vector<8x128xf32> -> vector<8x128xf32>
    %11 = arith.maximumf %8, %10 : vector<8x128xf32>
    %c0_9 = arith.constant 0 : index
    %c0_10 = arith.constant 0 : index
    %12 = vector.load %arg3[%c0_9, %c0_10] : memref<1x128xf32, #tpu.memory_space<vmem>>, vector<1x128xf32>
    %13 = vector.broadcast %12 : vector<1x128xf32> to vector<8x128xf32>
    %14 = arith.addf %11, %13 : vector<8x128xf32>
    %cst_11 = arith.constant 0.000000e+00 : f32
    %15 = vector.broadcast %cst_11 : f32 to vector<8x128xf32>
    %16 = arith.maximumf %14, %15 : vector<8x128xf32>
    %c0_12 = arith.constant 0 : index
    %c0_13 = arith.constant 0 : index
    %17 = vector.load %arg4[%c0_12, %c0_13] : memref<128x2xf32, #tpu.memory_space<vmem>>, vector<128x2xf32>
    %cst_14 = arith.constant dense<0.000000e+00> : vector<8x2xf32>
    %18 = tpu.matmul %16, %17, %cst_14 {dimension_numbers = #tpu.dot_dimension_numbers<[1], [0], [0], [1], [0, 0, 1, 1], [], []>} : vector<8x128xf32>, vector<128x2xf32>, vector<8x2xf32> -> vector<8x2xf32>
    %c0_15 = arith.constant 0 : index
    %c0_16 = arith.constant 0 : index
    %19 = vector.load %arg5[%c0_15, %c0_16] : memref<1x2xf32, #tpu.memory_space<vmem>>, vector<1x2xf32>
    %20 = vector.broadcast %19 : vector<1x2xf32> to vector<8x2xf32>
    %21 = arith.addf %18, %20 : vector<8x2xf32>
    %c0_17 = arith.constant 0 : index
    %c0_18 = arith.constant 0 : index
    %22 = vector.load %arg6[%c0_17, %c0_18] : memref<8x2xf32, #tpu.memory_space<vmem>>, vector<8x2xf32>
    tpu.vector_store %arg6[%c0_17, %c0_18], %21 {strides = array<i32>} : memref<8x2xf32, #tpu.memory_space<vmem>>, vector<8x2xf32>,
    return
  }
  func.func @transform_0(%arg0: i32) -> (i32, i32) {
    %c0_i32 = arith.constant 0 : i32
    %c0_i32_0 = arith.constant 0 : i32
    return %arg0, %c0_i32 : i32, i32
  }
  func.func @transform_1(%arg0: i32) -> (i32, i32) {
    %c0_i32 = arith.constant 0 : i32
    %c0_i32_0 = arith.constant 0 : i32
    %c0_i32_1 = arith.constant 0 : i32
    return %c0_i32, %c0_i32_0 : i32, i32
  }
  func.func @transform_2(%arg0: i32) -> (i32, i32) {
    %c0_i32 = arith.constant 0 : i32
    %c0_i32_0 = arith.constant 0 : i32
    %c0_i32_1 = arith.constant 0 : i32
    return %c0_i32, %c0_i32_0 : i32, i32
  }
  func.func @transform_3(%arg0: i32) -> (i32, i32) {
    %c0_i32 = arith.constant 0 : i32
    %c0_i32_0 = arith.constant 0 : i32
    %c0_i32_1 = arith.constant 0 : i32
    return %c0_i32, %c0_i32_0 : i32, i32
  }
  func.func @transform_4(%arg0: i32) -> (i32, i32) {
    %c0_i32 = arith.constant 0 : i32
    %c0_i32_0 = arith.constant 0 : i32
    %c0_i32_1 = arith.constant 0 : i32
    return %c0_i32, %c0_i32_0 : i32, i32
  }
  func.func @transform_5(%arg0: i32) -> (i32, i32) {
    %c0_i32 = arith.constant 0 : i32
    %c0_i32_0 = arith.constant 0 : i32
    return %arg0, %c0_i32 : i32, i32
  }
}

</mosaic_0001>

<llo_original>
// kernel: tile.8
$region0: #{tile.8}
  #allocation0 [shape = 's32[1]{0}', space=sflag, size = 0x4, scoped, tag = 'scoped memory for tile.8']
  %s0 = inlined_call_operand.vmem [shape: f32[10], index: 0, kind: input, shape index: {}]
  %s1 = inlined_call_operand.vmem [shape: f32[9,10], index: 1, kind: output, shape index: {}]
  // Predicated region
  $region2: #{tile.8} parent=0 // pred_check
    _
  $region3: #{tile.8} parent=0 // pred_check_branch
    %3 = sbr.rel (0) target = $region5
  $region4: #{tile.8} parent=0 // pred_region
    _
  $region5: #{tile.8} parent=0 // pred_fallthru
    _
  %v4 = vld [vmem:[%s0] ss:$0 sm:$0xff]
  %5 = vst [vmem:[%s1] sm:$0xff] %v4
  %s6 = scalar_lea.vmem %s1, 8
  %7 = vst [vmem:[%s6] sm:$0xff] %v4

// kernel: tile.9
$region0: #{tile.9}
  %s0 = inlined_call_operand.vmem [shape: f32[9,10], index: 0, kind: input, shape index: {}]
  %s1 = inlined_call_operand.vmem [shape: f32[90], index: 1, kind: output, shape index: {}]
  $region1: #{tile.9} parent=0
    #allocation0 [shape = 'u8[4096]{0}', space=vmem, size = 0x1000, scoped, tag = 'scoped mem for output reshape']
    %v2 = vld [vmem:[%s0] sm:$0x1]
    %vm3 = vcmask 80896
    %4 = vst.msk [vmem:[#allocation0] sm:$0x1] %vm3, %v2
    %s5 = scalar_lea.vmem %s0, 8
    %v6 = vld [vmem:[%s5] sm:$0x1]
    %7 = vrot.lane.b32.xlu0 %v6, 80
    %v8 = vpop.permute.xlu0 %7
    %vm9 = vcmask 736896
    %10 = vst.msk [vmem:[#allocation0] sm:$0x1] %vm9, %v8
    %s11 = scalar_lea.vmem %s0, 7
    %v12 = vld [vmem:[%s11] sm:$0x1]
    %13 = vrot.lane.b32.xlu0 %v12, 70
    %v14 = vpop.permute.xlu0 %13
    %vm15 = vcmask 654896
    %16 = vst.msk [vmem:[#allocation0] sm:$0x1] %vm15, %v14
    %s17 = scalar_lea.vmem %s0, 6
    %v18 = vld [vmem:[%s17] sm:$0x1]
    %19 = vrot.lane.b32.xlu0 %v18, 60
    %v20 = vpop.permute.xlu0 %19
    %vm21 = vcmask 572896
    %22 = vst.msk [vmem:[#allocation0] sm:$0x1] %vm21, %v20
    %s23 = scalar_lea.vmem %s0, 5
    %v24 = vld [vmem:[%s23] sm:$0x1]
    %25 = vrot.lane.b32.xlu0 %v24, 50
    %v26 = vpop.permute.xlu0 %25
    %vm27 = vcmask 490896
    %28 = vst.msk [vmem:[#allocation0] sm:$0x1] %vm27, %v26
    %s29 = scalar_lea.vmem %s0, 4
    %v30 = vld [vmem:[%s29] sm:$0x1]
    %31 = vrot.lane.b32.xlu0 %v30, 40
    %v32 = vpop.permute.xlu0 %31
    %vm33 = vcmask 408896
    %34 = vst.msk [vmem:[#allocation0] sm:$0x1] %vm33, %v32
    %s35 = scalar_lea.vmem %s0, 3
    %v36 = vld [vmem:[%s35] sm:$0x1]
    %37 = vrot.lane.b32.xlu0 %v36, 30
    %v38 = vpop.permute.xlu0 %37
    %vm39 = vcmask 326896
    %40 = vst.msk [vmem:[#allocation0] sm:$0x1] %vm39, %v38
    %s41 = scalar_lea.vmem %s0, 2
    %v42 = vld [vmem:[%s41] sm:$0x1]
    %43 = vrot.lane.b32.xlu0 %v42, 20
    %v44 = vpop.permute.xlu0 %43
    %vm45 = vcmask 244896
    %46 = vst.msk [vmem:[#allocation0] sm:$0x1] %vm45, %v44
    %s47 = scalar_lea.vmem %s0, 1
    %v48 = vld [vmem:[%s47] sm:$0x1]
    %49 = vrot.lane.b32.xlu0 %v48, 10
    %v50 = vpop.permute.xlu0 %49
    %vm51 = vcmask 162896
    %52 = vst.msk [vmem:[#allocation0] sm:$0x1] %vm51, %v50
    %s54 = sshllo.u32 0, 1
    %v56 = vld [vmem:[#allocation0] sm:%s54]
    %s57 = sshllo.u32 0, 1
    %58 = vst [vmem:[%s1] sm:%s57] %v56

// kernel: mymodel_forward.1
$region0: #{mymodel_forward.1}
  #allocation0 [shape = 'u32[]', space=smem, size = 0x4, offset = 0x4, fixed_abs, tag = 'smem constant byte address 0x4 - core index']
  #allocation1 [shape = 'u32[144,128]{1,0:T(1,128)}', space=vmem, size = 0x12000, scoped, tag = 'internal scratch']
  %s0 = inlined_call_operand.vmem [shape: f32[8,100], index: 0, kind: input, shape index: {}]
  %s1 = inlined_call_operand.vmem [shape: f32[100,512], index: 1, kind: input, shape index: {}]
  %s2 = inlined_call_operand.vmem [shape: f32[1,128], index: 2, kind: input, shape index: {}]
  %s3 = inlined_call_operand.vmem [shape: f32[128,2], index: 3, kind: input, shape index: {}]
  %s4 = inlined_call_operand.vmem [shape: f32[1,2], index: 4, kind: input, shape index: {}]
  %s5 = inlined_call_operand.vmem [shape: f32[8,2], index: 5, kind: output, shape index: {}]
  %s6 = sld [smem:[#allocation0]]
  $region30: #{mymodel_forward.1} parent=0
    _
  %s8 = ssub.s32 1, %s6
  %s9 = scalar_select 0, %s8, %s6
  // Predicated region
  $region2: #{mymodel_forward.1} parent=0 // pred_check
    _
  $region3: #{mymodel_forward.1} parent=0 // pred_check_branch
    %11 = sbr.rel (0) target = $region5
  $region4: #{mymodel_forward.1} parent=0 // pred_region
    _
  $region5: #{mymodel_forward.1} parent=0 // pred_fallthru
    _
  // Predicated region
  $region6: #{mymodel_forward.1} parent=0 // pred_check
    _
  $region7: #{mymodel_forward.1} parent=0 // pred_check_branch
    %13 = sbr.rel (0) target = $region9
  $region8: #{mymodel_forward.1} parent=0 // pred_region
    _
  $region9: #{mymodel_forward.1} parent=0 // pred_fallthru
    _
  // Predicated region
  $region10: #{mymodel_forward.1} parent=0 // pred_check
    _
  $region11: #{mymodel_forward.1} parent=0 // pred_check_branch
    %15 = sbr.rel (0) target = $region13
  $region12: #{mymodel_forward.1} parent=0 // pred_region
    _
  $region13: #{mymodel_forward.1} parent=0 // pred_fallthru
    _
  // Predicated region
  $region14: #{mymodel_forward.1} parent=0 // pred_check
    _
  $region15: #{mymodel_forward.1} parent=0 // pred_check_branch
    %17 = sbr.rel (0) target = $region17
  $region16: #{mymodel_forward.1} parent=0 // pred_region
    _
  $region17: #{mymodel_forward.1} parent=0 // pred_fallthru
    _
  // Predicated region
  $region18: #{mymodel_forward.1} parent=0 // pred_check
    _
  $region19: #{mymodel_forward.1} parent=0 // pred_check_branch
    %19 = sbr.rel (0) target = $region21
  $region20: #{mymodel_forward.1} parent=0 // pred_region
    _
  $region21: #{mymodel_forward.1} parent=0 // pred_fallthru
    _
  %v20 = vld [vmem:[%s0] sm:$0xff]
  %v21 = vld [vmem:[%s1] sm:$0xff]
  %v22 = vld [vmem:[%s1 + $0x20] sm:$0xff]
  %v23 = vld [vmem:[%s1 + $0x40] sm:$0xff]
  %v24 = vld [vmem:[%s1 + $0x60] sm:$0xff]
  %v25 = vld [vmem:[%s1 + $0x80] sm:$0xff]
  %v26 = vld [vmem:[%s1 + $0xa0] sm:$0xff]
  %v27 = vld [vmem:[%s1 + $0xc0] sm:$0xff]
  %v28 = vld [vmem:[%s1 + $0xe0] sm:$0xff]
  %v29 = vld [vmem:[%s1 + $0x100] sm:$0xff]
  %v30 = vld [vmem:[%s1 + $0x120] sm:$0xff]
  %v31 = vld [vmem:[%s1 + $0x140] sm:$0xff]
  %v32 = vld [vmem:[%s1 + $0x160] sm:$0xff]
  %v33 = vld [vmem:[%s1 + $0x180] sm:$0xf]
  %vm34 = vcmask 818176
  %v36 = vsel %vm34, %v20, 0
  %vm38 = vcmask 1043456
  %v40 = vsel %vm38, %v33, 0
  %42 = vmatprep.subr.mxu0 0.0
  %43 = vmatpush1.msra.mxu0 %v21
  %44 = vmatprep.subr.mxu0 0.0
  %45 = vmatpush1.msra.mxu0 %v22
  %46 = vmatprep.subr.mxu0 0.0
  %47 = vmatpush1.msra.mxu0 %v23
  %48 = vmatprep.subr.mxu0 0.0
  %49 = vmatpush1.msra.mxu0 %v24
  %50 = vmatprep.subr.mxu0 0.0
  %51 = vmatpush1.msra.mxu0 %v25
  %52 = vmatprep.subr.mxu0 0.0
  %53 = vmatpush1.msra.mxu0 %v26
  %54 = vmatprep.subr.mxu0 0.0
  %55 = vmatpush1.msra.mxu0 %v27
  %56 = vmatprep.subr.mxu0 0.0
  %57 = vmatpush1.msra.mxu0 %v28
  %58 = vmatprep.subr.mxu0 0.0
  %59 = vmatpush1.msra.mxu0 %v29
  %60 = vmatprep.subr.mxu0 0.0
  %61 = vmatpush1.msra.mxu0 %v30
  %62 = vmatprep.subr.mxu0 0.0
  %63 = vmatpush1.msra.mxu0 %v31
  %64 = vmatprep.subr.mxu0 0.0
  %65 = vmatpush1.msra.mxu0 %v32
  %66 = vmatprep.subr.mxu0 0.0
  %67 = vmatpush1.msra.mxu0 %v40
  %68 = vmatprep.subr.mxu0 0.0
  %69 = vmatpush1.msra.mxu0 0.0
  %70 = vmatprep.subr.mxu0 0.0
  %71 = vmatpush1.msra.mxu0 0.0
  %72 = vmatprep.subr.mxu0 0.0
  %73 = vmatpush1.msra.mxu0 0.0
  %74 = vmatprep.subr.mxu0 0.0
  %75 = vmatpush1.msra.mxu0 0.0
  %76 = vmatprep.subr.mxu0 0.0
  %77 = vmatpush1.msra.mxu0 0.0
  %78 = vmatprep.subr.mxu0 0.0
  %79 = vmatpush1.msra.mxu0 0.0
  %80 = vmatprep.subr.mxu0 0.0
  %81 = vmatpush1.msra.mxu0 0.0
  %82 = vmatprep.subr.mxu0 0.0
  %83 = vmatpush1.msra.mxu0 0.0
  %84 = vmatprep.subr.mxu0 0.0
  %85 = vmatpush1.msra.mxu0 0.0
  %86 = vmatprep.subr.mxu0 0.0
  %87 = vmatpush1.msra.mxu0 0.0
  %88 = vmatprep.subr.mxu0 0.0
  %89 = vmatpush1.msra.mxu0 0.0
  %90 = vmatprep.subr.mxu0 0.0
  %91 = vmatpush1.msra.mxu0 0.0
  %92 = vmatprep.subr.mxu0 0.0
  %93 = vmatpush1.msra.mxu0 0.0
  %94 = vmatprep.subr.mxu0 0.0
  %95 = vmatpush1.msra.mxu0 0.0
  %96 = vmatprep.subr.mxu0 0.0
  %97 = vmatpush1.msra.mxu0 0.0
  %98 = vmatprep.subr.mxu0 0.0
  %99 = vmatpush1.msra.mxu0 0.0
  %100 = vmatprep.subr.mxu0 0.0
  %101 = vmatpush1.msra.mxu0 0.0
  %102 = vmatprep.subr.mxu0 0.0
  %103 = vmatpush1.msra.mxu0 0.0
  %104 = vmatprep.subr.mxu0 0.0
  %105 = vmatpush1.msra.mxu0 0.0
  %106 = vmatprep.mubr.f32.mxu0 0.0
  %107 = vmatmul.mubr.f32.gmra.mrb[0].mxu0 %v36
  %v108 = vpop.f32.mrb[0].mxu0
  %v109 = vadd.f32 0.0, %v108
  %v110 = vpop.f32.mrb[0].mxu0
  %111 = vdwg.mxu0
  %v112 = vld [vmem:[%s1 + $0x8] sm:$0xff]
  %v113 = vld [vmem:[%s1 + $0x28] sm:$0xff]
  %v114 = vld [vmem:[%s1 + $0x48] sm:$0xff]
  %v115 = vld [vmem:[%s1 + $0x68] sm:$0xff]
  %v116 = vld [vmem:[%s1 + $0x88] sm:$0xff]
  %v117 = vld [vmem:[%s1 + $0xa8] sm:$0xff]
  %v118 = vld [vmem:[%s1 + $0xc8] sm:$0xff]
  %v119 = vld [vmem:[%s1 + $0xe8] sm:$0xff]
  %v120 = vld [vmem:[%s1 + $0x108] sm:$0xff]
  %v121 = vld [vmem:[%s1 + $0x128] sm:$0xff]
  %v122 = vld [vmem:[%s1 + $0x148] sm:$0xff]
  %v123 = vld [vmem:[%s1 + $0x168] sm:$0xff]
  %v124 = vld [vmem:[%s1 + $0x188] sm:$0xf]
  %v126 = vsel %vm38, %v124, 0
  %128 = vmatprep.subr.mxu0 0.0
  %129 = vmatpush1.msra.mxu0 %v112
  %130 = vmatprep.subr.mxu0 0.0
  %131 = vmatpush1.msra.mxu0 %v113
  %132 = vmatprep.subr.mxu0 0.0
  %133 = vmatpush1.msra.mxu0 %v114
  %134 = vmatprep.subr.mxu0 0.0
  %135 = vmatpush1.msra.mxu0 %v115
  %136 = vmatprep.subr.mxu0 0.0
  %137 = vmatpush1.msra.mxu0 %v116
  %138 = vmatprep.subr.mxu0 0.0
  %139 = vmatpush1.msra.mxu0 %v117
  %140 = vmatprep.subr.mxu0 0.0
  %141 = vmatpush1.msra.mxu0 %v118
  %142 = vmatprep.subr.mxu0 0.0
  %143 = vmatpush1.msra.mxu0 %v119
  %144 = vmatprep.subr.mxu0 0.0
  %145 = vmatpush1.msra.mxu0 %v120
  %146 = vmatprep.subr.mxu0 0.0
  %147 = vmatpush1.msra.mxu0 %v121
  %148 = vmatprep.subr.mxu0 0.0
  %149 = vmatpush1.msra.mxu0 %v122
  %150 = vmatprep.subr.mxu0 0.0
  %151 = vmatpush1.msra.mxu0 %v123
  %152 = vmatprep.subr.mxu0 0.0
  %153 = vmatpush1.msra.mxu0 %v126
  %154 = vmatprep.subr.mxu0 0.0
  %155 = vmatpush1.msra.mxu0 0.0
  %156 = vmatprep.subr.mxu0 0.0
  %157 = vmatpush1.msra.mxu0 0.0
  %158 = vmatprep.subr.mxu0 0.0
  %159 = vmatpush1.msra.mxu0 0.0
  %160 = vmatprep.subr.mxu0 0.0
  %161 = vmatpush1.msra.mxu0 0.0
  %162 = vmatprep.subr.mxu0 0.0
  %163 = vmatpush1.msra.mxu0 0.0
  %164 = vmatprep.subr.mxu0 0.0
  %165 = vmatpush1.msra.mxu0 0.0
  %166 = vmatprep.subr.mxu0 0.0
  %167 = vmatpush1.msra.mxu0 0.0
  %168 = vmatprep.subr.mxu0 0.0
  %169 = vmatpush1.msra.mxu0 0.0
  %170 = vmatprep.subr.mxu0 0.0
  %171 = vmatpush1.msra.mxu0 0.0
  %172 = vmatprep.subr.mxu0 0.0
  %173 = vmatpush1.msra.mxu0 0.0
  %174 = vmatprep.subr.mxu0 0.0
  %175 = vmatpush1.msra.mxu0 0.0
  %176 = vmatprep.subr.mxu0 0.0
  %177 = vmatpush1.msra.mxu0 0.0
  %178 = vmatprep.subr.mxu0 0.0
  %179 = vmatpush1.msra.mxu0 0.0
  %180 = vmatprep.subr.mxu0 0.0
  %181 = vmatpush1.msra.mxu0 0.0
  %182 = vmatprep.subr.mxu0 0.0
  %183 = vmatpush1.msra.mxu0 0.0
  %184 = vmatprep.subr.mxu0 0.0
  %185 = vmatpush1.msra.mxu0 0.0
  %186 = vmatprep.subr.mxu0 0.0
  %187 = vmatpush1.msra.mxu0 0.0
  %188 = vmatprep.subr.mxu0 0.0
  %189 = vmatpush1.msra.mxu0 0.0
  %190 = vmatprep.subr.mxu0 0.0
  %191 = vmatpush1.msra.mxu0 0.0
  %192 = vmatprep.mubr.f32.mxu0 0.0
  %193 = vmatmul.mubr.f32.gmra.mrb[0].mxu0 %v36
  %v194 = vpop.f32.mrb[0].mxu0
  %v195 = vadd.f32 0.0, %v194
  %v196 = vpop.f32.mrb[0].mxu0
  %197 = vdwg.mxu0
  %v198 = vmax.f32 %v109, %v195
  %v199 = vld [vmem:[%s1 + $0x10] sm:$0xff]
  %v200 = vld [vmem:[%s1 + $0x30] sm:$0xff]
  %v201 = vld [vmem:[%s1 + $0x50] sm:$0xff]
  %v202 = vld [vmem:[%s1 + $0x70] sm:$0xff]
  %v203 = vld [vmem:[%s1 + $0x90] sm:$0xff]
  %v204 = vld [vmem:[%s1 + $0xb0] sm:$0xff]
  %v205 = vld [vmem:[%s1 + $0xd0] sm:$0xff]
  %v206 = vld [vmem:[%s1 + $0xf0] sm:$0xff]
  %v207 = vld [vmem:[%s1 + $0x110] sm:$0xff]
  %v208 = vld [vmem:[%s1 + $0x130] sm:$0xff]
  %v209 = vld [vmem:[%s1 + $0x150] sm:$0xff]
  %v210 = vld [vmem:[%s1 + $0x170] sm:$0xff]
  %v211 = vld [vmem:[%s1 + $0x190] sm:$0xf]
  %v213 = vsel %vm38, %v211, 0
  %215 = vmatprep.subr.mxu0 0.0
  %216 = vmatpush1.msra.mxu0 %v199
  %217 = vmatprep.subr.mxu0 0.0
  %218 = vmatpush1.msra.mxu0 %v200
  %219 = vmatprep.subr.mxu0 0.0
  %220 = vmatpush1.msra.mxu0 %v201
  %221 = vmatprep.subr.mxu0 0.0
  %222 = vmatpush1.msra.mxu0 %v202
  %223 = vmatprep.subr.mxu0 0.0
  %224 = vmatpush1.msra.mxu0 %v203
  %225 = vmatprep.subr.mxu0 0.0
  %226 = vmatpush1.msra.mxu0 %v204
  %227 = vmatprep.subr.mxu0 0.0
  %228 = vmatpush1.msra.mxu0 %v205
  %229 = vmatprep.subr.mxu0 0.0
  %230 = vmatpush1.msra.mxu0 %v206
  %231 = vmatprep.subr.mxu0 0.0
  %232 = vmatpush1.msra.mxu0 %v207
  %233 = vmatprep.subr.mxu0 0.0
  %234 = vmatpush1.msra.mxu0 %v208
  %235 = vmatprep.subr.mxu0 0.0
  %236 = vmatpush1.msra.mxu0 %v209
  %237 = vmatprep.subr.mxu0 0.0
  %238 = vmatpush1.msra.mxu0 %v210
  %239 = vmatprep.subr.mxu0 0.0
  %240 = vmatpush1.msra.mxu0 %v213
  %241 = vmatprep.subr.mxu0 0.0
  %242 = vmatpush1.msra.mxu0 0.0
  %243 = vmatprep.subr.mxu0 0.0
  %244 = vmatpush1.msra.mxu0 0.0
  %245 = vmatprep.subr.mxu0 0.0
  %246 = vmatpush1.msra.mxu0 0.0
  %247 = vmatprep.subr.mxu0 0.0
  %248 = vmatpush1.msra.mxu0 0.0
  %249 = vmatprep.subr.mxu0 0.0
  %250 = vmatpush1.msra.mxu0 0.0
  %251 = vmatprep.subr.mxu0 0.0
  %252 = vmatpush1.msra.mxu0 0.0
  %253 = vmatprep.subr.mxu0 0.0
  %254 = vmatpush1.msra.mxu0 0.0
  %255 = vmatprep.subr.mxu0 0.0
  %256 = vmatpush1.msra.mxu0 0.0
  %257 = vmatprep.subr.mxu0 0.0
  %258 = vmatpush1.msra.mxu0 0.0
  %259 = vmatprep.subr.mxu0 0.0
  %260 = vmatpush1.msra.mxu0 0.0
  %261 = vmatprep.subr.mxu0 0.0
  %262 = vmatpush1.msra.mxu0 0.0
  %263 = vmatprep.subr.mxu0 0.0
  %264 = vmatpush1.msra.mxu0 0.0
  %265 = vmatprep.subr.mxu0 0.0
  %266 = vmatpush1.msra.mxu0 0.0
  %267 = vmatprep.subr.mxu0 0.0
  %268 = vmatpush1.msra.mxu0 0.0
  %269 = vmatprep.subr.mxu0 0.0
  %270 = vmatpush1.msra.mxu0 0.0
  %271 = vmatprep.subr.mxu0 0.0
  %272 = vmatpush1.msra.mxu0 0.0
  %273 = vmatprep.subr.mxu0 0.0
  %274 = vmatpush1.msra.mxu0 0.0
  %275 = vmatprep.subr.mxu0 0.0
  %276 = vmatpush1.msra.mxu0 0.0
  %277 = vmatprep.subr.mxu0 0.0
  %278 = vmatpush1.msra.mxu0 0.0
  %279 = vmatprep.mubr.f32.mxu0 0.0
  %280 = vmatmul.mubr.f32.gmra.mrb[0].mxu0 %v36
  %v281 = vpop.f32.mrb[0].mxu0
  %v282 = vadd.f32 0.0, %v281
  %v283 = vpop.f32.mrb[0].mxu0
  %284 = vdwg.mxu0
  %v285 = vmax.f32 %v198, %v282
  %v286 = vld [vmem:[%s1 + $0x18] sm:$0xff]
  %v287 = vld [vmem:[%s1 + $0x38] sm:$0xff]
  %v288 = vld [vmem:[%s1 + $0x58] sm:$0xff]
  %v289 = vld [vmem:[%s1 + $0x78] sm:$0xff]
  %v290 = vld [vmem:[%s1 + $0x98] sm:$0xff]
  %v291 = vld [vmem:[%s1 + $0xb8] sm:$0xff]
  %v292 = vld [vmem:[%s1 + $0xd8] sm:$0xff]
  %v293 = vld [vmem:[%s1 + $0xf8] sm:$0xff]
  %v294 = vld [vmem:[%s1 + $0x118] sm:$0xff]
  %v295 = vld [vmem:[%s1 + $0x138] sm:$0xff]
  %v296 = vld [vmem:[%s1 + $0x158] sm:$0xff]
  %v297 = vld [vmem:[%s1 + $0x178] sm:$0xff]
  %v298 = vld [vmem:[%s1 + $0x198] sm:$0xf]
  %v300 = vsel %vm38, %v298, 0
  %302 = vmatprep.subr.mxu0 0.0
  %303 = vmatpush1.msra.mxu0 %v286
  %304 = vmatprep.subr.mxu0 0.0
  %305 = vmatpush1.msra.mxu0 %v287
  %306 = vmatprep.subr.mxu0 0.0
  %307 = vmatpush1.msra.mxu0 %v288
  %308 = vmatprep.subr.mxu0 0.0
  %309 = vmatpush1.msra.mxu0 %v289
  %310 = vmatprep.subr.mxu0 0.0
  %311 = vmatpush1.msra.mxu0 %v290
  %312 = vmatprep.subr.mxu0 0.0
  %313 = vmatpush1.msra.mxu0 %v291
  %314 = vmatprep.subr.mxu0 0.0
  %315 = vmatpush1.msra.mxu0 %v292
  %316 = vmatprep.subr.mxu0 0.0
  %317 = vmatpush1.msra.mxu0 %v293
  %318 = vmatprep.subr.mxu0 0.0
  %319 = vmatpush1.msra.mxu0 %v294
  %320 = vmatprep.subr.mxu0 0.0
  %321 = vmatpush1.msra.mxu0 %v295
  %322 = vmatprep.subr.mxu0 0.0
  %323 = vmatpush1.msra.mxu0 %v296
  %324 = vmatprep.subr.mxu0 0.0
  %325 = vmatpush1.msra.mxu0 %v297
  %326 = vmatprep.subr.mxu0 0.0
  %327 = vmatpush1.msra.mxu0 %v300
  %328 = vmatprep.subr.mxu0 0.0
  %329 = vmatpush1.msra.mxu0 0.0
  %330 = vmatprep.subr.mxu0 0.0
  %331 = vmatpush1.msra.mxu0 0.0
  %332 = vmatprep.subr.mxu0 0.0
  %333 = vmatpush1.msra.mxu0 0.0
  %334 = vmatprep.subr.mxu0 0.0
  %335 = vmatpush1.msra.mxu0 0.0
  %336 = vmatprep.subr.mxu0 0.0
  %337 = vmatpush1.msra.mxu0 0.0
  %338 = vmatprep.subr.mxu0 0.0
  %339 = vmatpush1.msra.mxu0 0.0
  %340 = vmatprep.subr.mxu0 0.0
  %341 = vmatpush1.msra.mxu0 0.0
  %342 = vmatprep.subr.mxu0 0.0
  %343 = vmatpush1.msra.mxu0 0.0
  %344 = vmatprep.subr.mxu0 0.0
  %345 = vmatpush1.msra.mxu0 0.0
  %346 = vmatprep.subr.mxu0 0.0
  %347 = vmatpush1.msra.mxu0 0.0
  %348 = vmatprep.subr.mxu0 0.0
  %349 = vmatpush1.msra.mxu0 0.0
  %350 = vmatprep.subr.mxu0 0.0
  %351 = vmatpush1.msra.mxu0 0.0
  %352 = vmatprep.subr.mxu0 0.0
  %353 = vmatpush1.msra.mxu0 0.0
  %354 = vmatprep.subr.mxu0 0.0
  %355 = vmatpush1.msra.mxu0 0.0
  %356 = vmatprep.subr.mxu0 0.0
  %357 = vmatpush1.msra.mxu0 0.0
  %358 = vmatprep.subr.mxu0 0.0
  %359 = vmatpush1.msra.mxu0 0.0
  %360 = vmatprep.subr.mxu0 0.0
  %361 = vmatpush1.msra.mxu0 0.0
  %362 = vmatprep.subr.mxu0 0.0
  %363 = vmatpush1.msra.mxu0 0.0
  %364 = vmatprep.subr.mxu0 0.0
  %365 = vmatpush1.msra.mxu0 0.0
  %366 = vmatprep.mubr.f32.mxu0 0.0
  %367 = vmatmul.mubr.f32.gmra.mrb[0].mxu0 %v36
  %v368 = vpop.f32.mrb[0].mxu0
  %v369 = vadd.f32 0.0, %v368
  %v370 = vpop.f32.mrb[0].mxu0
  %371 = vdwg.mxu0
  %v372 = vmax.f32 %v285, %v369
  %v373 = vld [vmem:[%s2] sm:$0x1]
  %v375 = vlaneseq
  %v376 = vshrl.u32 %v375, 7
  %v377 = vsub.s32 0, %v376
  %v378 = vrot.slane %v373, %v377
  %v380 = vadd.f32 %v372, %v378
  %v381 = vmax.f32 %v380, 0.0
  %v382 = vld [vmem:[%s3] sm:$0xff]
  %v383 = vld [vmem:[%s3 + $0x8] sm:$0xff]
  %v384 = vld [vmem:[%s3 + $0x10] sm:$0xff]
  %v385 = vld [vmem:[%s3 + $0x18] sm:$0xff]
  %v386 = vld [vmem:[%s3 + $0x20] sm:$0xff]
  %v387 = vld [vmem:[%s3 + $0x28] sm:$0xff]
  %v388 = vld [vmem:[%s3 + $0x30] sm:$0xff]
  %v389 = vld [vmem:[%s3 + $0x38] sm:$0xff]
  %v390 = vld [vmem:[%s3 + $0x40] sm:$0xff]
  %v391 = vld [vmem:[%s3 + $0x48] sm:$0xff]
  %v392 = vld [vmem:[%s3 + $0x50] sm:$0xff]
  %v393 = vld [vmem:[%s3 + $0x58] sm:$0xff]
  %v394 = vld [vmem:[%s3 + $0x60] sm:$0xff]
  %v395 = vld [vmem:[%s3 + $0x68] sm:$0xff]
  %v396 = vld [vmem:[%s3 + $0x70] sm:$0xff]
  %v397 = vld [vmem:[%s3 + $0x78] sm:$0xff]
  %v398 = vld [vmem:[%s4] sm:$0x1]
  %v400 = vlaneseq
  %v401 = vshrl.u32 %v400, 7
  %v402 = vsub.s32 0, %v401
  %v403 = vrot.slane %v398, %v402
  %405 = vmatprep.subr.mxu0 0.0
  %406 = vmatpush1.msra.mxu0 %v382
  %407 = vmatprep.subr.mxu0 0.0
  %408 = vmatpush1.msra.mxu0 %v383
  %409 = vmatprep.subr.mxu0 0.0
  %410 = vmatpush1.msra.mxu0 %v384
  %411 = vmatprep.subr.mxu0 0.0
  %412 = vmatpush1.msra.mxu0 %v385
  %413 = vmatprep.subr.mxu0 0.0
  %414 = vmatpush1.msra.mxu0 %v386
  %415 = vmatprep.subr.mxu0 0.0
  %416 = vmatpush1.msra.mxu0 %v387
  %417 = vmatprep.subr.mxu0 0.0
  %418 = vmatpush1.msra.mxu0 %v388
  %419 = vmatprep.subr.mxu0 0.0
  %420 = vmatpush1.msra.mxu0 %v389
  %421 = vmatprep.subr.mxu0 0.0
  %422 = vmatpush1.msra.mxu0 %v390
  %423 = vmatprep.subr.mxu0 0.0
  %424 = vmatpush1.msra.mxu0 %v391
  %425 = vmatprep.subr.mxu0 0.0
  %426 = vmatpush1.msra.mxu0 %v392
  %427 = vmatprep.subr.mxu0 0.0
  %428 = vmatpush1.msra.mxu0 %v393
  %429 = vmatprep.subr.mxu0 0.0
  %430 = vmatpush1.msra.mxu0 %v394
  %431 = vmatprep.subr.mxu0 0.0
  %432 = vmatpush1.msra.mxu0 %v395
  %433 = vmatprep.subr.mxu0 0.0
  %434 = vmatpush1.msra.mxu0 %v396
  %435 = vmatprep.subr.mxu0 0.0
  %436 = vmatpush1.msra.mxu0 %v397
  %437 = vmatprep.subr.mxu0 0.0
  %438 = vmatpush1.msra.mxu0 0.0
  %439 = vmatprep.subr.mxu0 0.0
  %440 = vmatpush1.msra.mxu0 0.0
  %441 = vmatprep.subr.mxu0 0.0
  %442 = vmatpush1.msra.mxu0 0.0
  %443 = vmatprep.subr.mxu0 0.0
  %444 = vmatpush1.msra.mxu0 0.0
  %445 = vmatprep.subr.mxu0 0.0
  %446 = vmatpush1.msra.mxu0 0.0
  %447 = vmatprep.subr.mxu0 0.0
  %448 = vmatpush1.msra.mxu0 0.0
  %449 = vmatprep.subr.mxu0 0.0
  %450 = vmatpush1.msra.mxu0 0.0
  %451 = vmatprep.subr.mxu0 0.0
  %452 = vmatpush1.msra.mxu0 0.0
  %453 = vmatprep.subr.mxu0 0.0
  %454 = vmatpush1.msra.mxu0 0.0
  %455 = vmatprep.subr.mxu0 0.0
  %456 = vmatpush1.msra.mxu0 0.0
  %457 = vmatprep.subr.mxu0 0.0
  %458 = vmatpush1.msra.mxu0 0.0
  %459 = vmatprep.subr.mxu0 0.0
  %460 = vmatpush1.msra.mxu0 0.0
  %461 = vmatprep.subr.mxu0 0.0
  %462 = vmatpush1.msra.mxu0 0.0
  %463 = vmatprep.subr.mxu0 0.0
  %464 = vmatpush1.msra.mxu0 0.0
  %465 = vmatprep.subr.mxu0 0.0
  %466 = vmatpush1.msra.mxu0 0.0
  %467 = vmatprep.subr.mxu0 0.0
  %468 = vmatpush1.msra.mxu0 0.0
  %469 = vmatprep.mubr.f32.mxu0 0.0
  %470 = vmatmul.mubr.f32.gmra.mrb[0].mxu0 %v381
  %v471 = vpop.f32.mrb[0].mxu0
  %v472 = vadd.f32 %v403, %v471
  %v473 = vpop.f32.mrb[0].mxu0
  %474 = vdwg.mxu0
  %vm475 = vcmask 15360
  %476 = vst.msk [vmem:[%s5] sm:$0xff] %vm475, %v472
  // Predicated region
  $region22: #{mymodel_forward.1} parent=0 // pred_check
    _
  $region23: #{mymodel_forward.1} parent=0 // pred_check_branch
    %478 = sbr.rel (0) target = $region25
  $region24: #{mymodel_forward.1} parent=0 // pred_region
    _
  $region25: #{mymodel_forward.1} parent=0 // pred_fallthru
    _
  // Predicated region
  $region26: #{mymodel_forward.1} parent=0 // pred_check
    _
  $region27: #{mymodel_forward.1} parent=0 // pred_check_branch
    %480 = sbr.rel (0) target = $region29
  $region28: #{mymodel_forward.1} parent=0 // pred_region
    _
  $region29: #{mymodel_forward.1} parent=0 // pred_fallthru
    _

</llo_original>
